<compile_context>
chip_gen: v7x
topology: tpu7x:2x2x1
jax: 0.10.0
libtpu: 0.0.40
codegen_flags: <defaults>
</compile_context>

<pallas_src>
import math

import jax
import jax.numpy as jnp
from jax.experimental import pallas as pl
from jax.experimental.pallas import tpu as pltpu


def _sum_sublane_kernel(x_ref, o_ref):
    """x_ref: (L, cols) tile in VMEM; o_ref: (1, cols) lane-dense result row.

    Reduce over the sublane (first) axis so the reduced vector is already on
    lanes -> one unmasked store. Accumulate in f32 regardless of input dtype.
    """
    acc = jnp.sum(x_ref[...].astype(jnp.float32), axis=0, keepdims=True)
    o_ref[...] = acc.astype(o_ref.dtype)


# Below this the whole transposed slab just lives in VMEM (gridless): no
# pipeline / per-grid-step overhead, which is the only cost that matters at
# toy sizes.
_GRIDLESS_BYTES = 2 * 1024 * 1024

# Per-tile budget for the gridded path: 2x (double-buffered) input tile must
# fit the smallest scoped-VMEM default with headroom (v5e: 16 MiB, v7x: 32 MiB
# scoped / 64 MiB physical).
_TILE_BUDGET_BYTES = 8 * 1024 * 1024


def _auto_block_cols(rows, last, itemsize):
    """Largest multiple-of-128 divisor of `rows` whose input tile fits budget."""
    if rows % 128:
        return None
    max_cols = max(128, _TILE_BUDGET_BYTES // max(1, 2 * last * itemsize))
    cols = min(rows, (max_cols // 128) * 128)
    while cols >= 128:
        if rows % cols == 0:
            return cols
        cols -= 128
    return None


def sum_last(x, *, block_cols=None):
    """Pallas implementation of X.sum(axis=-1) for an arbitrary-rank input."""
    lead = x.shape[:-1]
    last = x.shape[-1]
    rows = math.prod(lead)

    # Layout plumbing (wrapper side): reduction axis on sublanes, output on
    # lanes. (L, rows) with L=16, rows=128 is 2 fully-packed f32 vregs.
    x2 = x.reshape(rows, last).T                      # (L, rows)
    out_shape = jax.ShapeDtypeStruct((1, rows), x.dtype)

    itemsize = jnp.dtype(x.dtype).itemsize
    slab_bytes = rows * last * itemsize

    if block_cols is None and slab_bytes > _GRIDLESS_BYTES:
        block_cols = _auto_block_cols(rows, last, itemsize)

    use_grid = (
        block_cols is not None
        and 0 < block_cols < rows
        and rows % block_cols == 0
        and block_cols % 128 == 0
    )

    if not use_grid:
        # Gridless: whole arrays resident in VMEM (block == full array, so
        # sub-(8,128) shapes such as the rank-1 case are legal).
        out2 = pl.pallas_call(
            _sum_sublane_kernel,
            out_shape=out_shape,
            in_specs=[pl.BlockSpec(memory_space=pltpu.MemorySpace.VMEM)],
            out_specs=pl.BlockSpec(memory_space=pltpu.MemorySpace.VMEM),
        )(x2)
    else:
        # Tiled path for large inputs: independent column blocks of the
        # (L, rows) slab, rows axis sharded across TensorCores on v7x.
        out2 = pl.pallas_call(
            _sum_sublane_kernel,
            out_shape=out_shape,
            grid=(rows // block_cols,),
            in_specs=[pl.BlockSpec((last, block_cols), lambda i: (0, i))],
            out_specs=pl.BlockSpec((1, block_cols), lambda i: (0, i)),
            compiler_params=pltpu.CompilerParams(
                dimension_semantics=("parallel",),
            ),
        )(x2)

    return out2.reshape(lead)


def _reference(x):
    """Pure-JAX reference mirroring the PyTorch forward (f32 accumulation)."""
    return jnp.sum(x.astype(jnp.float32), axis=-1).astype(x.dtype)


if __name__ == "__main__":
    # Toy shape from the module spec: gridless, launch-overhead-bound path.
    key = jax.random.PRNGKey(0)
    x = jax.random.normal(key, (2, 4, 16, 16), dtype=jnp.float32)
    out = jax.block_until_ready(sum_last(x))
    ref = _reference(x)
    assert out.shape == (2, 4, 16), out.shape
    assert jnp.allclose(out, ref, atol=1e-5, rtol=1e-5)

    # Tiled / megacore-parallel path (also exercises f32 accumulation of bf16).
    xb = jax.random.normal(jax.random.PRNGKey(1), (4, 8, 32, 64), dtype=jnp.bfloat16)
    outb = jax.block_until_ready(sum_last(xb, block_cols=512))
    refb = _reference(xb)
    assert outb.shape == (4, 8, 32), outb.shape
    assert jnp.allclose(
        outb.astype(jnp.float32), refb.astype(jnp.float32), atol=1e-1, rtol=5e-2
    )

    # Rank-1 edge case (lead=(), rows=1): block == full array, so legal.
    xv = jax.random.normal(jax.random.PRNGKey(2), (16,), dtype=jnp.float32)
    outv = jax.block_until_ready(sum_last(xv))
    assert outv.shape == ()
    assert jnp.allclose(outv, jnp.sum(xv), atol=1e-5, rtol=1e-5)

    print("KERNEL_OK")
</pallas_src>

<mosaic_0001>
module attributes {stable_mosaic.version = 11 : i64} {
  func.func @_sum_sublane_kernel(%arg0: memref<16x128xf32, #tpu.memory_space<vmem>>, %arg1: memref<1x128xf32, #tpu.memory_space<vmem>>) attributes {dimension_semantics = [], scalar_prefetch = 0 : i64, scratch_operands = 0 : i64, tpu.core_type = #tpu.core_type<tc>} {
    %c0 = arith.constant 0 : index
    %c0_0 = arith.constant 0 : index
    %0 = vector.load %arg0[%c0, %c0_0] : memref<16x128xf32, #tpu.memory_space<vmem>>, vector<16x128xf32>
    %cst = arith.constant dense<0.000000e+00> : vector<128xf32>
    %1 = vector.multi_reduction <add>, %0, %cst [0] : vector<16x128xf32> to vector<128xf32>
    %2 = vector.shape_cast %1 : vector<128xf32> to vector<1x128xf32>
    %c0_1 = arith.constant 0 : index
    %c0_2 = arith.constant 0 : index
    %3 = vector.load %arg1[%c0_1, %c0_2] : memref<1x128xf32, #tpu.memory_space<vmem>>, vector<1x128xf32>
    tpu.vector_store %arg1[%c0_1, %c0_2], %2 {strides = array<i32>} : memref<1x128xf32, #tpu.memory_space<vmem>>, vector<1x128xf32>,
    return
  }
}

</mosaic_0001>

<llo_original>
// kernel: tpu_custom_call.1
$region0: #{tpu_custom_call.1}
  #allocation0 [shape = 'u32[]', space=smem, size = 0x4, offset = 0x4, fixed_abs, tag = 'smem constant byte address 0x4 - core index']
  #allocation1 [shape = 'u32[144,128]{1,0:T(1,128)}', space=vmem, size = 0x12000, scoped, tag = 'internal scratch']
  %s0 = inlined_call_operand.hbm [shape: f32[16,128], index: 0, kind: input, shape index: {}]
  %s1 = inlined_call_operand.hbm [shape: f32[1,128], index: 1, kind: output, shape index: {}]
  %s2 = sld [smem:[#allocation0]]
  $region18: #{tpu_custom_call.1} parent=0
    _
  %s4 = ssub.s32 1, %s2
  %s5 = scalar_select 0, %s4, %s2
  $region1: #{tpu_custom_call.1} parent=0
    #allocation2 [shape = 'u8[8192]{0}', space=vmem, size = 0x2000, scoped, tag = 'input window, operand 0, single buffered']
    #allocation3 [shape = 's32[1]{0}', space=sflag, size = 0x4, scoped, tag = 'scoped memory for tpu_custom_call.1']
    #allocation4 [shape = 's32[1]{0}', space=sflag, size = 0x4, scoped, tag = 'scoped memory for tpu_custom_call.1']
    #allocation5 [shape = 'u8[512]{0}', space=vmem, size = 0x400, scoped, tag = 'output window, operand 0, single buffered']
    %6 = vsyncpa [#allocation3], 0
    %7 = vsyncpa [#allocation4], 0
    // Predicated region
    $region2: #{tpu_custom_call.1} parent=1 // pred_check
      _
    $region3: #{tpu_custom_call.1} parent=1 // pred_check_branch
      %9 = sbr.rel (0) target = $region5
    $region4: #{tpu_custom_call.1} parent=1 // pred_region
      %s11 = ssub.s32 256, 256
      %12 = vsyncadd [#allocation3], %s11
      %s13 = sshll.u32 [#allocation2], 4
      %s14 = int_to_ptr.vmem [resolvable:$true] %s13
      %19 = dma.hbm_to_vmem [thread:$0]  %s0, 256, %s14, [#allocation3], 128, 128, 8
    $region5: #{tpu_custom_call.1} parent=1 // pred_fallthru
      _
    // Predicated region
    $region6: #{tpu_custom_call.1} parent=1 // pred_check
      _
    $region7: #{tpu_custom_call.1} parent=1 // pred_check_branch
      %21 = sbr.rel (0) target = $region9
    $region8: #{tpu_custom_call.1} parent=1 // pred_region
      %22 = dma.done [#allocation3], 256
    $region9: #{tpu_custom_call.1} parent=1 // pred_fallthru
      _
    %v23 = vld [vmem:[#allocation2] sm:$0xff]
    %v24 = vld [vmem:[#allocation2 + $0x8] sm:$0xff]
    %v25 = vadd.f32 %v23, %v24
    %v26 = vrot.slane %v25, 4
    %v27 = vadd.f32 %v25, %v26
    %v28 = vrot.slane %v27, 2
    %v29 = vadd.f32 %v27, %v28
    %v30 = vrot.slane %v29, 1
    %v31 = vadd.f32 %v29, %v30
    %32 = vst [vmem:[#allocation5] sm:$0x1] %v31
    // Predicated region
    $region10: #{tpu_custom_call.1} parent=1 // pred_check
      _
    $region11: #{tpu_custom_call.1} parent=1 // pred_check_branch
      %34 = sbr.rel (0) target = $region13
    $region12: #{tpu_custom_call.1} parent=1 // pred_region
      %s36 = ssub.s32 16, 16
      %37 = vsyncadd [#allocation4], %s36
      %s39 = sshll.u32 [#allocation5], 4
      %s40 = int_to_ptr.vmem [resolvable:$true] %s39
      %42 = dma.vmem_to_hbm [thread:$0]  %s40, 16, %s1, [#allocation4]
    $region13: #{tpu_custom_call.1} parent=1 // pred_fallthru
      _
    // Predicated region
    $region14: #{tpu_custom_call.1} parent=1 // pred_check
      _
    $region15: #{tpu_custom_call.1} parent=1 // pred_check_branch
      %44 = sbr.rel (0) target = $region17
    $region16: #{tpu_custom_call.1} parent=1 // pred_region
      %45 = dma.done [#allocation4], 16
    $region17: #{tpu_custom_call.1} parent=1 // pred_fallthru
      _
    %46 = vsyncpa [#allocation3], 1
    %47 = vsyncpa [#allocation4], 1

</llo_original>
